<compile_context>
chip_gen: v7x
topology: tpu7x:2x2x1
jax: 0.10.0
libtpu: 0.0.40
codegen_flags: <defaults>
</compile_context>

<pallas_src>
import functools

import jax
import jax.numpy as jnp
from jax.experimental import pallas as pl
from jax.experimental.pallas import tpu as pltpu


# VMEM budget used for tile sizing.  Chosen so the pipeline stays fully
# double-buffered even on v7x (64 MiB physical per TensorCore).
_VMEM_BUDGET = 40 * 1024 * 1024


def _round_up(v, m):
    return (v + m - 1) // m * m


def _pick_tile(n_pad, target):
    """Largest multiple of 128 that divides n_pad and is <= target."""
    t = max(128, min(target, n_pad))
    t -= t % 128
    while n_pad % t != 0:
        t -= 128
    return t


def _pad_size(n):
    """Padded node count: multiple of 128, bumped to a multiple of 512 when
    that keeps big tiles available without inflating A by more than ~15%."""
    N = _round_up(n, 128)
    if N >= 1024:
        N512 = _round_up(n, 512)
        if N512 * N512 <= int(1.15 * N * N):
            N = N512
    return N


def _vmem_needed(N, d, tm, tk, cdt, odt, x_resident, a_bufs):
    a_bytes = a_bufs * tm * tk * cdt
    x_bytes = (2 * N * d * cdt) if x_resident else (2 * tk * d * cdt)
    out_bytes = 2 * tm * d * odt
    acc_bytes = tm * d * 4
    return a_bytes + x_bytes + out_bytes + acc_bytes


def _agg_kernel(a_ref, x_ref, o_ref, acc_ref, *, tk, x_resident):
    # grid = (row_blocks, k_blocks); k (neighbor reduction) is innermost and
    # "arbitrary".  acc_ref is a (tm, d) f32 VMEM scratch reused across k.
    k = pl.program_id(1)

    @pl.when(k == 0)
    def _init():
        acc_ref[...] = jnp.zeros_like(acc_ref)

    if x_resident:
        # x is VMEM-resident (full array, constant block index): slice the
        # rows belonging to this k block.
        start = pl.multiple_of(k * tk, tk)
        x_blk = x_ref[pl.ds(start, tk), :]
    else:
        x_blk = x_ref[...]

    acc_ref[...] += jnp.dot(a_ref[...], x_blk,
                            preferred_element_type=jnp.float32)

    @pl.when(k == pl.num_programs(1) - 1)
    def _store():
        o_ref[...] = acc_ref[...].astype(o_ref.dtype)


def prepare_adjacency(A, *, compute_dtype=jnp.bfloat16):
    """One-time (per-graph) prep: pad A to the tiling-friendly size and cast
    to the MXU compute dtype.  Hoisted out of the per-layer aggregation so the
    f32 pad/cast passes over A are not repeated every call."""
    n, n2 = A.shape
    assert n == n2, "A must be square [n, n]"
    N = _pad_size(n)
    if N != n:
        A = jnp.pad(A, ((0, N - n), (0, N - n)))
    return A.astype(compute_dtype), n


def lightgcn_agg(A_prep, x, n, *, tm_target=512, tk_target=2048,
                 out_dtype=None):
    """Pallas LightGCNAgg.forward: returns A @ x (rows 0..n-1).

    A_prep is the padded/cast adjacency from prepare_adjacency.  Pass
    out_dtype=jnp.bfloat16 to chain LightGCN layers without re-casting x.
    """
    N = A_prep.shape[0]
    assert A_prep.shape == (N, N)
    nx, d = x.shape
    assert nx == n and n <= N, "x must be [n, d] matching A"

    compute_dtype = A_prep.dtype
    cdt = jnp.dtype(compute_dtype).itemsize
    out_dtype = x.dtype if out_dtype is None else out_dtype
    odt = jnp.dtype(out_dtype).itemsize

    # Per-layer x prep is small (N*d) compared with A (N*N).
    if N != n:
        x = jnp.pad(x, ((0, N - n), (0, 0)))
    x_c = x.astype(compute_dtype)

    # tm: keep >= 2 row blocks whenever possible so both v7x TensorCores get
    # work on the "parallel" axis; single-TC v5e/v6e are unaffected.
    tm = _pick_tile(N, min(tm_target, max(128, N // 2)))

    # x resident in VMEM (fetched once) when it comfortably fits.
    x_resident = 2 * N * d * cdt <= 16 * 1024 * 1024

    # tk: biggest tile that keeps the double-buffered pipeline within budget.
    tk = _pick_tile(N, 4096 if x_resident else tk_target)
    while tk > 128 and _vmem_needed(N, d, tm, tk, cdt, odt,
                                    x_resident, 2) > _VMEM_BUDGET:
        tk = _pick_tile(N, tk - 128)

    grid = (N // tm, N // tk)

    # Triple-buffer the A stream only when there is headroom AND enough grid
    # steps for the extra buffer to hide DMA start latency.
    use_buf3 = (grid[0] * grid[1] >= 8 and
                _vmem_needed(N, d, tm, tk, cdt, odt, x_resident, 3)
                <= _VMEM_BUDGET)
    a_bufs = 3 if use_buf3 else 2

    a_spec_kwargs = {}
    if use_buf3:
        a_spec_kwargs["pipeline_mode"] = pl.Buffered(3)
    a_spec = pl.BlockSpec((tm, tk), lambda i, k: (i, k), **a_spec_kwargs)

    if x_resident:
        # Constant block index: Pallas fetches x exactly once.
        x_spec = pl.BlockSpec((N, d), lambda i, k: (0, 0))
    else:
        x_spec = pl.BlockSpec((tk, d), lambda i, k: (k, 0))

    needed = _vmem_needed(N, d, tm, tk, cdt, odt, x_resident, a_bufs)
    vmem_limit = int(min(max(needed * 5 // 4 + (4 << 20), 32 << 20), 60 << 20))

    bytes_accessed = (
        N * N * cdt                                         # A streamed once
        + (N * d * cdt if x_resident else grid[0] * N * d * cdt)
        + N * d * odt                                       # output writeback
    )
    cost = pl.CostEstimate(flops=2 * N * N * d, transcendentals=0,
                           bytes_accessed=int(bytes_accessed))

    kernel = functools.partial(_agg_kernel, tk=tk, x_resident=x_resident)

    out = pl.pallas_call(
        kernel,
        out_shape=jax.ShapeDtypeStruct((N, d), out_dtype),
        grid_spec=pltpu.PrefetchScalarGridSpec(
            num_scalar_prefetch=0,
            grid=grid,
            in_specs=[a_spec, x_spec],
            out_specs=pl.BlockSpec((tm, d), lambda i, k: (i, 0)),
            scratch_shapes=[pltpu.VMEM((tm, d), jnp.float32)],
        ),
        compiler_params=pltpu.CompilerParams(
            dimension_semantics=("parallel", "arbitrary"),
            vmem_limit_bytes=vmem_limit,
        ),
        cost_estimate=cost,
    )(A_prep, x_c)

    # TODO(synk): block-sparse skipping (scalar-prefetched per-row-block list
    # of nonzero k-blocks driving a data-dependent index_map) is not
    # implemented; at LightGCN-style element sparsity nearly every big block
    # is nonzero, so dense streaming of A is the right default.

    return out[:n]


if __name__ == "__main__":
    # Small deterministic example consistent with the module: n nodes, d = hidden_size.
    n, hidden_size = 256, 128

    key = jax.random.PRNGKey(0)
    k_a, k_mask, k_x = jax.random.split(key, 3)

    # Sparse-ish adjacency: random values, ~85% zeroed, row-normalized
    # (typical LightGCN propagation matrix).
    vals = jax.random.uniform(k_a, (n, n), dtype=jnp.float32)
    mask = (jax.random.uniform(k_mask, (n, n)) < 0.15).astype(jnp.float32)
    A = vals * mask
    row_sum = jnp.maximum(A.sum(axis=1, keepdims=True), 1e-12)
    A = A / row_sum

    x = jax.random.normal(k_x, (n, hidden_size), dtype=jnp.float32)

    # One-time, per-graph prep (pad + bf16 cast), reused across layers.
    A_prep, n_nodes = prepare_adjacency(A)
    agg = jax.jit(functools.partial(lightgcn_agg, n=n_nodes))

    out = jax.block_until_ready(agg(A_prep, x))
    assert out.shape == (n, hidden_size)
    assert out.dtype == x.dtype

    # Tight check vs. a matmul on the same bf16-cast operands (f32 math):
    # only accumulation-order differences remain.
    A_bf = A.astype(jnp.bfloat16).astype(jnp.float32)
    x_bf = x.astype(jnp.bfloat16).astype(jnp.float32)
    ref_bf = jnp.dot(A_bf, x_bf, precision=jax.lax.Precision.HIGHEST)
    assert jnp.allclose(out, ref_bf, atol=2e-3, rtol=2e-3), float(
        jnp.max(jnp.abs(out - ref_bf))
    )

    # Loose check vs. the full-precision reference (bf16 rounding of A and x).
    ref = jnp.dot(A, x, precision=jax.lax.Precision.HIGHEST)
    assert jnp.allclose(out, ref, atol=5e-2, rtol=5e-2), float(
        jnp.max(jnp.abs(out - ref))
    )

    # Second "LightGCN layer" reusing the prepped A (the hoisted cost pays off).
    out2 = jax.block_until_ready(agg(A_prep, out))
    assert out2.shape == (n, hidden_size)

    print("KERNEL_OK")
</pallas_src>

<mosaic_0001>
module attributes {stable_mosaic.version = 11 : i64} {
  func.func @_agg_kernel(%arg0: i32, %arg1: i32, %arg2: memref<128x256xbf16, #tpu.memory_space<vmem>>, %arg3: memref<256x128xbf16, #tpu.memory_space<vmem>>, %arg4: memref<128x128xf32, #tpu.memory_space<vmem>>, %arg5: memref<128x128xf32, #tpu.memory_space<vmem>>) attributes {dimension_semantics = [#tpu.dimension_semantics<parallel>, #tpu.dimension_semantics<arbitrary>], iteration_bounds = array<i64: 2, 1>, scalar_prefetch = 0 : i64, scratch_operands = 1 : i64, tpu.core_type = #tpu.core_type<tc>, window_params = [{transform_indices = @transform_0, window_bounds = array<i64: 128, 256>}, {pipeline_mode = #tpu.pipeline_mode<synchronous>, transform_indices = @transform_1, window_bounds = array<i64: 256, 128>}, {transform_indices = @transform_2, window_bounds = array<i64: 128, 128>}]} {
    %c0_i32 = arith.constant 0 : i32
    %0 = arith.cmpi eq, %arg1, %c0_i32 : i32
    %1 = arith.extui %0 : i1 to i32
    %c0_i32_0 = arith.constant 0 : i32
    %2 = arith.cmpi ne, %1, %c0_i32_0 : i32
    scf.if %2 {
      %cst_9 = arith.constant 0.000000e+00 : f32
      %15 = vector.broadcast %cst_9 : f32 to vector<128x128xf32>
      %c0_10 = arith.constant 0 : index
      %c0_11 = arith.constant 0 : index
      %16 = vector.load %arg5[%c0_10, %c0_11] : memref<128x128xf32, #tpu.memory_space<vmem>>, vector<128x128xf32>
      tpu.vector_store %arg5[%c0_10, %c0_11], %15 {strides = array<i32>} : memref<128x128xf32, #tpu.memory_space<vmem>>, vector<128x128xf32>,
    } else {
    }
    %c256_i32 = arith.constant 256 : i32
    %3 = arith.muli %arg1, %c256_i32 : i32
    %4 = tpu.assume_multiple %3, 256 : i32
    %5 = arith.index_cast %4 : i32 to index
    %c0 = arith.constant 0 : index
    %6 = vector.load %arg3[%5, %c0] : memref<256x128xbf16, #tpu.memory_space<vmem>>, vector<256x128xbf16>
    %c0_1 = arith.constant 0 : index
    %c0_2 = arith.constant 0 : index
    %7 = vector.load %arg5[%c0_1, %c0_2] : memref<128x128xf32, #tpu.memory_space<vmem>>, vector<128x128xf32>
    %c0_3 = arith.constant 0 : index
    %c0_4 = arith.constant 0 : index
    %8 = vector.load %arg2[%c0_3, %c0_4] : memref<128x256xbf16, #tpu.memory_space<vmem>>, vector<128x256xbf16>
    %cst = arith.constant dense<0.000000e+00> : vector<128x128xf32>
    %9 = tpu.matmul %8, %6, %cst {dimension_numbers = #tpu.dot_dimension_numbers<[1], [0], [0], [1], [0, 0, 1, 1], [], []>} : vector<128x256xbf16>, vector<256x128xbf16>, vector<128x128xf32> -> vector<128x128xf32>
    %10 = arith.addf %7, %9 : vector<128x128xf32>
    %c0_5 = arith.constant 0 : index
    %c0_6 = arith.constant 0 : index
    %11 = vector.load %arg5[%c0_5, %c0_6] : memref<128x128xf32, #tpu.memory_space<vmem>>, vector<128x128xf32>
    tpu.vector_store %arg5[%c0_5, %c0_6], %10 {strides = array<i32>} : memref<128x128xf32, #tpu.memory_space<vmem>>, vector<128x128xf32>,
    %c0_i32_7 = arith.constant 0 : i32
    %12 = arith.cmpi eq, %arg1, %c0_i32_7 : i32
    %13 = arith.extui %12 : i1 to i32
    %c0_i32_8 = arith.constant 0 : i32
    %14 = arith.cmpi ne, %13, %c0_i32_8 : i32
    scf.if %14 {
      %c0_9 = arith.constant 0 : index
      %c0_10 = arith.constant 0 : index
      %15 = vector.load %arg5[%c0_9, %c0_10] : memref<128x128xf32, #tpu.memory_space<vmem>>, vector<128x128xf32>
      %c0_11 = arith.constant 0 : index
      %c0_12 = arith.constant 0 : index
      %16 = vector.load %arg4[%c0_11, %c0_12] : memref<128x128xf32, #tpu.memory_space<vmem>>, vector<128x128xf32>
      tpu.vector_store %arg4[%c0_11, %c0_12], %15 {strides = array<i32>} : memref<128x128xf32, #tpu.memory_space<vmem>>, vector<128x128xf32>,
    } else {
    }
    return
  }
  func.func @transform_0(%arg0: i32, %arg1: i32) -> (i32, i32) {
    %c0_i32 = arith.constant 0 : i32
    return %arg0, %arg1 : i32, i32
  }
  func.func @transform_1(%arg0: i32, %arg1: i32) -> (i32, i32) {
    %c0_i32 = arith.constant 0 : i32
    %c0_i32_0 = arith.constant 0 : i32
    %c0_i32_1 = arith.constant 0 : i32
    return %c0_i32, %c0_i32_0 : i32, i32
  }
  func.func @transform_2(%arg0: i32, %arg1: i32) -> (i32, i32) {
    %c0_i32 = arith.constant 0 : i32
    %c0_i32_0 = arith.constant 0 : i32
    return %arg0, %c0_i32 : i32, i32
  }
}

</mosaic_0001>

<llo_original>
// kernel: lightgcn_agg.1
$region0: #{lightgcn_agg.1}
  #allocation0 [shape = 'u32[]', space=smem, size = 0x4, offset = 0x4, fixed_abs, tag = 'smem constant byte address 0x4 - core index']
  #allocation1 [shape = 'u32[144,128]{1,0:T(1,128)}', space=vmem, size = 0x12000, scoped, tag = 'internal scratch']
  #allocation2 [shape = 'f32[128,128]{1,0:T(8,128)}', space=vmem, size = 0x10000, scoped, tag = 'scratch operand']
  %s0 = inlined_call_operand.vmem [shape: bf16[256,256], index: 0, kind: input, shape index: {}]
  %s1 = inlined_call_operand.vmem [shape: bf16[256,128], index: 1, kind: input, shape index: {}]
  %s2 = inlined_call_operand.hbm [shape: f32[256,128], index: 2, kind: output, shape index: {}]
  %s3 = sld [smem:[#allocation0]]
  $region49: #{lightgcn_agg.1} parent=0
    _
  %s5 = ssub.s32 1, %s3
  %s6 = scalar_select 0, %s5, %s3
  $region1: #{lightgcn_agg.1} parent=0
    #allocation3 [shape = 'u8[131072]{0}', space=vmem, size = 0x20000, scoped, tag = 'output window, operand 0']
    #allocation4 [shape = 's32[2]{0}', space=sflag, size = 0x8, scoped, tag = 'scoped memory for lightgcn_agg.1']
    %7 = vsyncpa [#allocation4], 0
    %s8 = scalar_lea.sflag [#allocation4], 1
    %9 = vsyncpa %s8, 0
    loop: start=0, step=1, limit=4
    $region2: #{lightgcn_agg.1} parent=1 // loop_pre_header
      _
    $region3: #{lightgcn_agg.1} parent=1 // loop_header
      %s11 = sphi 0, %s15
      %p12 = scmp.ge.s32.totalorder %s11, 4
      %s18 = sphi 0, %s30
      %s19 = sphi 0, %s26
      %s20 = sphi 0, %s18
      %s21 = sphi 0, %s19
      %s22 = sphi 0, %s20
      %s23 = sphi 0, %s21
      %s35 = sphi 0, %s37
      %s38 = sphi 0, %s35
      %s39 = sphi 0, %s38
      %s55 = sphi 0, %s39
      %s59 = sphi 0, %s59
      %s61 = sphi 0, %s59
      %s62 = sphi 0, %s61
      %s76 = sphi 0, %s62
      %s82 = sphi 0, %s84
      %s85 = sphi 0, %s82
      %s86 = sphi 0, %s85
      %s102 = sphi 0, %s86
    $region4: #{lightgcn_agg.1} parent=1 // loop_header_branch
      %14 = sbr.rel (%p12) target = $region8
    $region5: #{lightgcn_agg.1} parent=1 // loop_body
      %s16 = ssub.s32 %s11, 1
      %s17 = ssub.s32 %s11, 2
      %s24 = sadd.s32 1, %s19
      %p25 = scmp.ge.s32.totalorder %s24, 1
      %s26 = scalar_select %p25, 0, %s24
      %s27 = sadd.s32 1, %s18
      %s28 = scalar_select %p25, %s27, %s18
      %p29 = scmp.ge.s32.totalorder %s28, 2
      %s30 = scalar_select %p29, 0, %s28
      %s31 = ssub.s32 %s18, %s30
      %s32 = ssub.s32 %s19, %s26
      %s33 = sor.u32 %s31, %s32
      %p34 = scmp.eq.s32.totalorder %s33, 0
      %s36 = sadd.s32 %s35, 1
      %s37 = scalar_select %p34, %s35, %s36
      %p40 = pneg %p34
      %p41 = scmp.eq.s32.totalorder %s11, 1
      %p42 = por %p40, %p41
      %p43 = scmp.ne.s32.totalorder %s35, %s38
      %p44 = scmp.eq.s32.totalorder %s11, 0
      %p45 = por %p43, %p44
      %p46 = scmp.ne.s32.totalorder %s35, %s38
      %p47 = scmp.eq.s32.totalorder %s16, 1
      %p48 = por %p46, %p47
      %p49 = scmp.ne.s32.totalorder %s38, %s39
      %p50 = scmp.eq.s32.totalorder %s16, 0
      %p51 = por %p49, %p50
      %p52 = scmp.ne.s32.totalorder %s38, %s39
      %p53 = scmp.eq.s32.totalorder %s17, 1
      %p54 = por %p52, %p53
      %p56 = scmp.ne.s32.totalorder %s39, %s55
      %p57 = scmp.eq.s32.totalorder %s17, 0
      %p58 = por %p56, %p57
      %s60 = sadd.s32 %s59, 1
      %p63 = scmp.eq.s32.totalorder %s11, 1
      %p64 = scmp.ne.s32.totalorder %s59, %s61
      %p65 = scmp.eq.s32.totalorder %s11, 0
      %p66 = por %p64, %p65
      %p67 = scmp.ne.s32.totalorder %s59, %s61
      %p68 = scmp.eq.s32.totalorder %s16, 1
      %p69 = por %p67, %p68
      %p70 = scmp.ne.s32.totalorder %s61, %s62
      %p71 = scmp.eq.s32.totalorder %s16, 0
      %p72 = por %p70, %p71
      %p73 = scmp.ne.s32.totalorder %s61, %s62
      %p74 = scmp.eq.s32.totalorder %s17, 1
      %p75 = por %p73, %p74
      %p77 = scmp.ne.s32.totalorder %s62, %s76
      %p78 = scmp.eq.s32.totalorder %s17, 0
      %p79 = por %p77, %p78
      %s80 = ssub.s32 %s18, %s30
      %p81 = scmp.eq.s32.totalorder %s80, 0
      %s83 = sadd.s32 %s82, 1
      %s84 = scalar_select %p81, %s82, %s83
      %p87 = pneg %p81
      %p88 = scmp.eq.s32.totalorder %s11, 1
      %p89 = por %p87, %p88
      %p90 = scmp.ne.s32.totalorder %s82, %s85
      %p91 = scmp.eq.s32.totalorder %s11, 0
      %p92 = por %p90, %p91
      %p93 = scmp.ne.s32.totalorder %s82, %s85
      %p94 = scmp.eq.s32.totalorder %s16, 1
      %p95 = por %p93, %p94
      %p96 = scmp.ne.s32.totalorder %s85, %s86
      %p97 = scmp.eq.s32.totalorder %s16, 0
      %p98 = por %p96, %p97
      %p99 = scmp.ne.s32.totalorder %s85, %s86
      %p100 = scmp.eq.s32.totalorder %s17, 1
      %p101 = por %p99, %p100
      %p103 = scmp.ne.s32.totalorder %s86, %s102
      %p104 = scmp.eq.s32.totalorder %s17, 0
      %p105 = por %p103, %p104
      %p106 = scmp.le.s32.totalorder 1, %s11
      %p107 = scmp.lt.s32.totalorder %s11, 3
      %p108 = pnand %p106, %p107
      %p109 = pneg %p108
      // Predicated region
      $region9: #{lightgcn_agg.1} parent=5 // pred_check
        _
      $region10: #{lightgcn_agg.1} parent=5 // pred_check_branch
        %111 = sbr.rel (%p108) target = $region12
      $region11: #{lightgcn_agg.1} parent=5 // pred_region
        %s112 = ssub.s32 %s11, 1
        // Predicated region
        $region13: #{lightgcn_agg.1} parent=11 // pred_check
          %p113 = pneg %p72
        $region14: #{lightgcn_agg.1} parent=11 // pred_check_branch
          %115 = sbr.rel (%p113) target = $region16
        $region15: #{lightgcn_agg.1} parent=11 // pred_region
          _
        $region16: #{lightgcn_agg.1} parent=11 // pred_fallthru
          _
      $region12: #{lightgcn_agg.1} parent=5 // pred_fallthru
        _
      %p116 = scmp.lt.s32.totalorder %s11, 2
      // Predicated region
      $region17: #{lightgcn_agg.1} parent=5 // pred_check
        %p117 = pneg %p116
      $region18: #{lightgcn_agg.1} parent=5 // pred_check_branch
        %119 = sbr.rel (%p117) target = $region20
      $region19: #{lightgcn_agg.1} parent=5 // pred_region
        // Predicated region
        $region21: #{lightgcn_agg.1} parent=19 // pred_check
          %p120 = pneg %p45
        $region22: #{lightgcn_agg.1} parent=19 // pred_check_branch
          %122 = sbr.rel (%p120) target = $region24
        $region23: #{lightgcn_agg.1} parent=19 // pred_region
          %s123 = smul.u32 16, %s18
          %s124 = smul.u32 2, %s19
          %p125 = scmp.lt.s32.totalorder %s123, 31
          %s126 = scalar_select %p125, %s123, 31
          %p127 = scmp.lt.s32.totalorder %s124, 1
          %s128 = scalar_select %p127, %s124, 1
          %s129 = smul.addr %s126, 2
          %s130 = sadd.s32 %s128, %s129
          %s131 = smul.addr %s130, 4
          %s132 = scalar_lea.vmem %s0, %s131
          %s133 = smul.u32 16, %s18
          %s134 = smul.u32 2, %s19
        $region24: #{lightgcn_agg.1} parent=19 // pred_fallthru
          _
      $region20: #{lightgcn_agg.1} parent=5 // pred_fallthru
        _
      %p135 = scmp.le.s32.totalorder 1, %s11
      %p136 = scmp.lt.s32.totalorder %s11, 3
      %p137 = pnand %p135, %p136
      %p138 = pneg %p137
      // Predicated region
      $region25: #{lightgcn_agg.1} parent=5 // pred_check
        _
      $region26: #{lightgcn_agg.1} parent=5 // pred_check_branch
        %140 = sbr.rel (%p137) target = $region28
      $region27: #{lightgcn_agg.1} parent=5 // pred_region
        %s141 = ssub.s32 %s11, 1
        %s142 = smul.u32 16, %s20
        %s143 = smul.u32 2, %s21
        %p144 = scmp.lt.s32.totalorder %s142, 31
        %s145 = scalar_select %p144, %s142, 31
        %p146 = scmp.lt.s32.totalorder %s143, 1
        %s147 = scalar_select %p146, %s143, 1
        %s148 = smul.addr %s145, 2
        %s149 = sadd.s32 %s147, %s148
        %s150 = smul.addr %s149, 4
        %s151 = scalar_lea.vmem %s0, %s150
        %p152 = pneg %p51
        %p153 = pneg %p48
        %p154 = pneg %p72
        %p155 = pneg %p69
        %p156 = pneg %p98
        %p157 = pneg %p95
        %s158 = sand.u32 %s85, 1
        %s159 = scalar_lea.sflag [#allocation4], %s158
        %s160 = sand.u32 %s85, 1
        %s161 = smul.addr %s160, 128
        %s162 = scalar_lea.vmem [#allocation3], %s161
        %s163 = smul.u32 16, %s20
        %s164 = smul.u32 2, %s21
        %p165 = scmp.lt.s32.totalorder %s163, 31
        %s166 = scalar_select %p165, %s163, 31
        %p167 = scmp.lt.s32.totalorder %s164, 1
        %s168 = scalar_select %p167, %s164, 1
        %s169 = smul.addr %s166, 2
        %s170 = sadd.s32 %s168, %s169
        %s171 = smul.addr %s170, 4
        %s172 = scalar_lea.vmem %s0, %s171
        %s173 = smul.u32 16, %s20
        %s174 = smul.u32 2, %s21
        %s175 = smul.u32 16, %s20
        %p177 = scmp.eq.s32.totalorder %s21, 0
        // Predicated region
        $region29: #{lightgcn_agg.1} parent=27 // pred_check
          %p178 = pneg %p177
        $region30: #{lightgcn_agg.1} parent=27 // pred_check_branch
          %180 = sbr.rel (%p178) target = $region32
        $region31: #{lightgcn_agg.1} parent=27 // pred_region
          %181 = vst [vmem:[#allocation2] sm:$0xff] 0.0
          %182 = vst [vmem:[#allocation2 + $0x8] sm:$0xff] 0.0
          %183 = vst [vmem:[#allocation2 + $0x10] sm:$0xff] 0.0
          %184 = vst [vmem:[#allocation2 + $0x18] sm:$0xff] 0.0
          %185 = vst [vmem:[#allocation2 + $0x20] sm:$0xff] 0.0
          %186 = vst [vmem:[#allocation2 + $0x28] sm:$0xff] 0.0
          %187 = vst [vmem:[#allocation2 + $0x30] sm:$0xff] 0.0
          %188 = vst [vmem:[#allocation2 + $0x38] sm:$0xff] 0.0
          %189 = vst [vmem:[#allocation2 + $0x40] sm:$0xff] 0.0
          %190 = vst [vmem:[#allocation2 + $0x48] sm:$0xff] 0.0
          %191 = vst [vmem:[#allocation2 + $0x50] sm:$0xff] 0.0
          %192 = vst [vmem:[#allocation2 + $0x58] sm:$0xff] 0.0
          %193 = vst [vmem:[#allocation2 + $0x60] sm:$0xff] 0.0
          %194 = vst [vmem:[#allocation2 + $0x68] sm:$0xff] 0.0
          %195 = vst [vmem:[#allocation2 + $0x70] sm:$0xff] 0.0
          %196 = vst [vmem:[#allocation2 + $0x78] sm:$0xff] 0.0
        $region32: #{lightgcn_agg.1} parent=27 // pred_fallthru
          _
        %s197 = smul.u32 %s21, 256
        %s198 = sshra.s32 %s197, 3
        %s199 = sand.u32 %s197, 7
        %s200 = smul.addr %s198, 4
        %s201 = scalar_lea.vmem %s1, %s200
        %v202 = vld [vmem:[%s201] sm:$0xf]
        %v203 = vld [vmem:[%s201 + $0x4] sm:$0xf]
        %v204 = vld [vmem:[%s201 + $0x8] sm:$0xf]
        %v205 = vld [vmem:[%s201 + $0xc] sm:$0xf]
        %v206 = vld [vmem:[%s201 + $0x10] sm:$0xf]
        %v207 = vld [vmem:[%s201 + $0x14] sm:$0xf]
        %v208 = vld [vmem:[%s201 + $0x18] sm:$0xf]
        %v209 = vld [vmem:[%s201 + $0x1c] sm:$0xf]
        %v210 = vld [vmem:[%s201 + $0x20] sm:$0xf]
        %v211 = vld [vmem:[%s201 + $0x24] sm:$0xf]
        %v212 = vld [vmem:[%s201 + $0x28] sm:$0xf]
        %v213 = vld [vmem:[%s201 + $0x2c] sm:$0xf]
        %v214 = vld [vmem:[%s201 + $0x30] sm:$0xf]
        %v215 = vld [vmem:[%s201 + $0x34] sm:$0xf]
        %v216 = vld [vmem:[%s201 + $0x38] sm:$0xf]
        %v217 = vld [vmem:[%s201 + $0x3c] sm:$0xf]
        %v218 = vld [vmem:[%s201 + $0x40] sm:$0xf]
        %v219 = vld [vmem:[%s201 + $0x44] sm:$0xf]
        %v220 = vld [vmem:[%s201 + $0x48] sm:$0xf]
        %v221 = vld [vmem:[%s201 + $0x4c] sm:$0xf]
        %v222 = vld [vmem:[%s201 + $0x50] sm:$0xf]
        %v223 = vld [vmem:[%s201 + $0x54] sm:$0xf]
        %v224 = vld [vmem:[%s201 + $0x58] sm:$0xf]
        %v225 = vld [vmem:[%s201 + $0x5c] sm:$0xf]
        %v226 = vld [vmem:[%s201 + $0x60] sm:$0xf]
        %v227 = vld [vmem:[%s201 + $0x64] sm:$0xf]
        %v228 = vld [vmem:[%s201 + $0x68] sm:$0xf]
        %v229 = vld [vmem:[%s201 + $0x6c] sm:$0xf]
        %v230 = vld [vmem:[%s201 + $0x70] sm:$0xf]
        %v231 = vld [vmem:[%s201 + $0x74] sm:$0xf]
        %v232 = vld [vmem:[%s201 + $0x78] sm:$0xf]
        %v233 = vld [vmem:[%s201 + $0x7c] sm:$0xf]
        %v234 = vld [vmem:[#allocation2] sm:$0xff]
        %v235 = vld [vmem:[#allocation2 + $0x8] sm:$0xff]
        %v236 = vld [vmem:[#allocation2 + $0x10] sm:$0xff]
        %v237 = vld [vmem:[#allocation2 + $0x18] sm:$0xff]
        %v238 = vld [vmem:[#allocation2 + $0x20] sm:$0xff]
        %v239 = vld [vmem:[#allocation2 + $0x28] sm:$0xff]
        %v240 = vld [vmem:[#allocation2 + $0x30] sm:$0xff]
        %v241 = vld [vmem:[#allocation2 + $0x38] sm:$0xff]
        %v242 = vld [vmem:[#allocation2 + $0x40] sm:$0xff]
        %v243 = vld [vmem:[#allocation2 + $0x48] sm:$0xff]
        %v244 = vld [vmem:[#allocation2 + $0x50] sm:$0xff]
        %v245 = vld [vmem:[#allocation2 + $0x58] sm:$0xff]
        %v246 = vld [vmem:[#allocation2 + $0x60] sm:$0xff]
        %v247 = vld [vmem:[#allocation2 + $0x68] sm:$0xff]
        %v248 = vld [vmem:[#allocation2 + $0x70] sm:$0xff]
        %v249 = vld [vmem:[#allocation2 + $0x78] sm:$0xff]
        %v250 = vld [vmem:[%s172] sm:$0xff]
        %v251 = vld [vmem:[%s172 + $0x8] sm:$0xff]
        %v252 = vld [vmem:[%s172 + $0x10] sm:$0xff]
        %v253 = vld [vmem:[%s172 + $0x18] sm:$0xff]
        %v254 = vld [vmem:[%s172 + $0x20] sm:$0xff]
        %v255 = vld [vmem:[%s172 + $0x28] sm:$0xff]
        %v256 = vld [vmem:[%s172 + $0x30] sm:$0xff]
        %v257 = vld [vmem:[%s172 + $0x38] sm:$0xff]
        %v258 = vld [vmem:[%s172 + $0x40] sm:$0xff]
        %v259 = vld [vmem:[%s172 + $0x48] sm:$0xff]
        %v260 = vld [vmem:[%s172 + $0x50] sm:$0xff]
        %v261 = vld [vmem:[%s172 + $0x58] sm:$0xff]
        %v262 = vld [vmem:[%s172 + $0x60] sm:$0xff]
        %v263 = vld [vmem:[%s172 + $0x68] sm:$0xff]
        %v264 = vld [vmem:[%s172 + $0x70] sm:$0xff]
        %v265 = vld [vmem:[%s172 + $0x78] sm:$0xff]
        %v282 = vunpack.c.l.b16 %v250
        %v283 = vunpack.c.h.b16 %v250
        %v284 = vunpack.c.l.b16 %v251
        %v285 = vunpack.c.h.b16 %v251
        %v286 = vunpack.c.l.b16 %v252
        %v287 = vunpack.c.h.b16 %v252
        %v288 = vunpack.c.l.b16 %v253
        %v289 = vunpack.c.h.b16 %v253
        %v290 = vunpack.c.l.b16 %v254
        %v291 = vunpack.c.h.b16 %v254
        %v292 = vunpack.c.l.b16 %v255
        %v293 = vunpack.c.h.b16 %v255
        %v294 = vunpack.c.l.b16 %v256
        %v295 = vunpack.c.h.b16 %v256
        %v296 = vunpack.c.l.b16 %v257
        %v297 = vunpack.c.h.b16 %v257
        %v298 = vunpack.c.l.b16 %v258
        %v299 = vunpack.c.h.b16 %v258
        %v300 = vunpack.c.l.b16 %v259
        %v301 = vunpack.c.h.b16 %v259
        %v302 = vunpack.c.l.b16 %v260
        %v303 = vunpack.c.h.b16 %v260
        %v304 = vunpack.c.l.b16 %v261
        %v305 = vunpack.c.h.b16 %v261
        %v306 = vunpack.c.l.b16 %v262
        %v307 = vunpack.c.h.b16 %v262
        %v308 = vunpack.c.l.b16 %v263
        %v309 = vunpack.c.h.b16 %v263
        %v310 = vunpack.c.l.b16 %v264
        %v311 = vunpack.c.h.b16 %v264
        %v312 = vunpack.c.l.b16 %v265
        %v313 = vunpack.c.h.b16 %v265
        %v314 = vpack.c.b16 %v284, %v282
        %v315 = vpack.c.b16 %v285, %v283
        %v316 = vpack.c.b16 %v288, %v286
        %v317 = vpack.c.b16 %v289, %v287
        %v318 = vpack.c.b16 %v292, %v290
        %v319 = vpack.c.b16 %v293, %v291
        %v320 = vpack.c.b16 %v296, %v294
        %v321 = vpack.c.b16 %v297, %v295
        %v322 = vpack.c.b16 %v300, %v298
        %v323 = vpack.c.b16 %v301, %v299
        %v324 = vpack.c.b16 %v304, %v302
        %v325 = vpack.c.b16 %v305, %v303
        %v326 = vpack.c.b16 %v308, %v306
        %v327 = vpack.c.b16 %v309, %v307
        %v328 = vpack.c.b16 %v312, %v310
        %v329 = vpack.c.b16 %v313, %v311
        %v378 = vunpack.c.l.b16 %v202
        %v379 = vunpack.c.l.b16 %v203
        %v380 = vunpack.c.l.b16 %v204
        %v381 = vunpack.c.l.b16 %v205
        %v382 = vunpack.c.l.b16 %v206
        %v383 = vunpack.c.l.b16 %v207
        %v384 = vunpack.c.l.b16 %v208
        %v385 = vunpack.c.l.b16 %v209
        %v386 = vunpack.c.l.b16 %v210
        %v387 = vunpack.c.l.b16 %v211
        %v388 = vunpack.c.l.b16 %v212
        %v389 = vunpack.c.l.b16 %v213
        %v390 = vunpack.c.l.b16 %v214
        %v391 = vunpack.c.l.b16 %v215
        %v392 = vunpack.c.l.b16 %v216
        %v393 = vunpack.c.l.b16 %v217
        %v394 = vunpack.c.l.b16 %v218
        %v395 = vunpack.c.l.b16 %v219
        %v396 = vunpack.c.l.b16 %v220
        %v397 = vunpack.c.l.b16 %v221
        %v398 = vunpack.c.l.b16 %v222
        %v399 = vunpack.c.l.b16 %v223
        %v400 = vunpack.c.l.b16 %v224
        %v401 = vunpack.c.l.b16 %v225
        %v402 = vunpack.c.l.b16 %v226
        %v403 = vunpack.c.l.b16 %v227
        %v404 = vunpack.c.l.b16 %v228
        %v405 = vunpack.c.l.b16 %v229
        %v406 = vunpack.c.l.b16 %v230
        %v407 = vunpack.c.l.b16 %v231
        %v408 = vunpack.c.l.b16 %v232
        %v409 = vunpack.c.l.b16 %v233
        %v410 = vpack.c.b16 %v379, %v378
        %v411 = vpack.c.b16 %v381, %v380
        %v412 = vpack.c.b16 %v383, %v382
        %v413 = vpack.c.b16 %v385, %v384
        %v414 = vpack.c.b16 %v387, %v386
        %v415 = vpack.c.b16 %v389, %v388
        %v416 = vpack.c.b16 %v391, %v390
        %v417 = vpack.c.b16 %v393, %v392
        %v418 = vpack.c.b16 %v395, %v394
        %v419 = vpack.c.b16 %v397, %v396
        %v420 = vpack.c.b16 %v399, %v398
        %v421 = vpack.c.b16 %v401, %v400
        %v422 = vpack.c.b16 %v403, %v402
        %v423 = vpack.c.b16 %v405, %v404
        %v424 = vpack.c.b16 %v407, %v406
        %v425 = vpack.c.b16 %v409, %v408
        %442 = vmatprep.subr.bf16.mxu0 0
        %443 = vmatpush1.bf16.msra.mxu0 %v410
        %444 = vmatprep.subr.bf16.mxu0 0
        %445 = vmatpush1.bf16.msra.mxu0 %v411
        %446 = vmatprep.subr.bf16.mxu0 0
        %447 = vmatpush1.bf16.msra.mxu0 %v412
        %448 = vmatprep.subr.bf16.mxu0 0
        %449 = vmatpush1.bf16.msra.mxu0 %v413
        %450 = vmatprep.subr.bf16.mxu0 0
        %451 = vmatpush1.bf16.msra.mxu0 %v414
        %452 = vmatprep.subr.bf16.mxu0 0
        %453 = vmatpush1.bf16.msra.mxu0 %v415
        %454 = vmatprep.subr.bf16.mxu0 0
        %455 = vmatpush1.bf16.msra.mxu0 %v416
        %456 = vmatprep.subr.bf16.mxu0 0
        %457 = vmatpush1.bf16.msra.mxu0 %v417
        %458 = vmatprep.subr.bf16.mxu0 0
        %459 = vmatpush1.bf16.msra.mxu0 %v418
        %460 = vmatprep.subr.bf16.mxu0 0
        %461 = vmatpush1.bf16.msra.mxu0 %v419
        %462 = vmatprep.subr.bf16.mxu0 0
        %463 = vmatpush1.bf16.msra.mxu0 %v420
        %464 = vmatprep.subr.bf16.mxu0 0
        %465 = vmatpush1.bf16.msra.mxu0 %v421
        %466 = vmatprep.subr.bf16.mxu0 0
        %467 = vmatpush1.bf16.msra.mxu0 %v422
        %468 = vmatprep.subr.bf16.mxu0 0
        %469 = vmatpush1.bf16.msra.mxu0 %v423
        %470 = vmatprep.subr.bf16.mxu0 0
        %471 = vmatpush1.bf16.msra.mxu0 %v424
        %472 = vmatprep.subr.bf16.mxu0 0
        %473 = vmatpush1.bf16.msra.mxu0 %v425
        %474 = vmatprep.mubr.bf16.mxu0 %v315
        %475 = vmatmul.mubr.bf16.gmra.mrb[0].mxu0 %v314
        %v476 = vpop.f32.mrb[0].mxu0
        %v477 = vadd.f32 0.0, %v476
        %v478 = vpop.f32.mrb[0].mxu0
        %v479 = vpop.f32.mrb[0].mxu0
        %v480 = vadd.f32 0.0, %v479
        %v481 = vpop.f32.mrb[0].mxu0
        %482 = vmatprep.mubr.bf16.mxu0 %v317
        %483 = vmatmul.mubr.bf16.gmra.mrb[0].mxu0 %v316
        %v484 = vpop.f32.mrb[0].mxu0
        %v485 = vadd.f32 0.0, %v484
        %v486 = vpop.f32.mrb[0].mxu0
        %v487 = vpop.f32.mrb[0].mxu0
        %v488 = vadd.f32 0.0, %v487
        %v489 = vpop.f32.mrb[0].mxu0
        %490 = vmatprep.mubr.bf16.mxu0 %v319
        %491 = vmatmul.mubr.bf16.gmra.mrb[0].mxu0 %v318
        %v492 = vpop.f32.mrb[0].mxu0
        %v493 = vadd.f32 0.0, %v492
        %v494 = vpop.f32.mrb[0].mxu0
        %v495 = vpop.f32.mrb[0].mxu0
        %v496 = vadd.f32 0.0, %v495
        %v497 = vpop.f32.mrb[0].mxu0
        %498 = vmatprep.mubr.bf16.mxu0 %v321
        %499 = vmatmul.mubr.bf16.gmra.mrb[0].mxu0 %v320
        %v500 = vpop.f32.mrb[0].mxu0
        %v501 = vadd.f32 0.0, %v500
        %v502 = vpop.f32.mrb[0].mxu0
        %v503 = vpop.f32.mrb[0].mxu0
        %v504 = vadd.f32 0.0, %v503
        %v505 = vpop.f32.mrb[0].mxu0
        %506 = vmatprep.mubr.bf16.mxu0 %v323
        %507 = vmatmul.mubr.bf16.gmra.mrb[0].mxu0 %v322
        %v508 = vpop.f32.mrb[0].mxu0
        %v509 = vadd.f32 0.0, %v508
        %v510 = vpop.f32.mrb[0].mxu0
        %v511 = vpop.f32.mrb[0].mxu0
        %v512 = vadd.f32 0.0, %v511
        %v513 = vpop.f32.mrb[0].mxu0
        %514 = vmatprep.mubr.bf16.mxu0 %v325
        %515 = vmatmul.mubr.bf16.gmra.mrb[0].mxu0 %v324
        %v516 = vpop.f32.mrb[0].mxu0
        %v517 = vadd.f32 0.0, %v516
        %v518 = vpop.f32.mrb[0].mxu0
        %v519 = vpop.f32.mrb[0].mxu0
        %v520 = vadd.f32 0.0, %v519
        %v521 = vpop.f32.mrb[0].mxu0
        %522 = vmatprep.mubr.bf16.mxu0 %v327
        %523 = vmatmul.mubr.bf16.gmra.mrb[0].mxu0 %v326
        %v524 = vpop.f32.mrb[0].mxu0
        %v525 = vadd.f32 0.0, %v524
        %v526 = vpop.f32.mrb[0].mxu0
        %v527 = vpop.f32.mrb[0].mxu0
        %v528 = vadd.f32 0.0, %v527
        %v529 = vpop.f32.mrb[0].mxu0
        %530 = vmatprep.mubr.bf16.mxu0 %v329
        %531 = vmatmul.mubr.bf16.gmra.mrb[0].mxu0 %v328
        %v532 = vpop.f32.mrb[0].mxu0
        %v533 = vadd.f32 0.0, %v532
        %v534 = vpop.f32.mrb[0].mxu0
        %v535 = vpop.f32.mrb[0].mxu0
        %v536 = vadd.f32 0.0, %v535
        %v537 = vpop.f32.mrb[0].mxu0
        %538 = vdwg.mxu0
        %v539 = vadd.f32 %v234, %v477
        %v540 = vadd.f32 %v235, %v480
        %v541 = vadd.f32 %v236, %v485
        %v542 = vadd.f32 %v237, %v488
        %v543 = vadd.f32 %v238, %v493
        %v544 = vadd.f32 %v239, %v496
        %v545 = vadd.f32 %v240, %v501
        %v546 = vadd.f32 %v241, %v504
        %v547 = vadd.f32 %v242, %v509
        %v548 = vadd.f32 %v243, %v512
        %v549 = vadd.f32 %v244, %v517
        %v550 = vadd.f32 %v245, %v520
        %v551 = vadd.f32 %v246, %v525
        %v552 = vadd.f32 %v247, %v528
        %v553 = vadd.f32 %v248, %v533
        %v554 = vadd.f32 %v249, %v536
        %555 = vst [vmem:[#allocation2] sm:$0xff] %v539
        %556 = vst [vmem:[#allocation2 + $0x8] sm:$0xff] %v540
        %557 = vst [vmem:[#allocation2 + $0x10] sm:$0xff] %v541
        %558 = vst [vmem:[#allocation2 + $0x18] sm:$0xff] %v542
        %559 = vst [vmem:[#allocation2 + $0x20] sm:$0xff] %v543
        %560 = vst [vmem:[#allocation2 + $0x28] sm:$0xff] %v544
        %561 = vst [vmem:[#allocation2 + $0x30] sm:$0xff] %v545
        %562 = vst [vmem:[#allocation2 + $0x38] sm:$0xff] %v546
        %563 = vst [vmem:[#allocation2 + $0x40] sm:$0xff] %v547
        %564 = vst [vmem:[#allocation2 + $0x48] sm:$0xff] %v548
        %565 = vst [vmem:[#allocation2 + $0x50] sm:$0xff] %v549
        %566 = vst [vmem:[#allocation2 + $0x58] sm:$0xff] %v550
        %567 = vst [vmem:[#allocation2 + $0x60] sm:$0xff] %v551
        %568 = vst [vmem:[#allocation2 + $0x68] sm:$0xff] %v552
        %569 = vst [vmem:[#allocation2 + $0x70] sm:$0xff] %v553
        %570 = vst [vmem:[#allocation2 + $0x78] sm:$0xff] %v554
        // Predicated region
        $region33: #{lightgcn_agg.1} parent=27 // pred_check
          %p571 = pneg %p177
        $region34: #{lightgcn_agg.1} parent=27 // pred_check_branch
          %573 = sbr.rel (%p571) target = $region36
        $region35: #{lightgcn_agg.1} parent=27 // pred_region
          %v574 = vld [vmem:[#allocation2] sm:$0xff]
          %v575 = vld [vmem:[#allocation2 + $0x8] sm:$0xff]
          %v576 = vld [vmem:[#allocation2 + $0x10] sm:$0xff]
          %v577 = vld [vmem:[#allocation2 + $0x18] sm:$0xff]
          %v578 = vld [vmem:[#allocation2 + $0x20] sm:$0xff]
          %v579 = vld [vmem:[#allocation2 + $0x28] sm:$0xff]
          %v580 = vld [vmem:[#allocation2 + $0x30] sm:$0xff]
          %v581 = vld [vmem:[#allocation2 + $0x38] sm:$0xff]
          %v582 = vld [vmem:[#allocation2 + $0x40] sm:$0xff]
          %v583 = vld [vmem:[#allocation2 + $0x48] sm:$0xff]
          %v584 = vld [vmem:[#allocation2 + $0x50] sm:$0xff]
          %v585 = vld [vmem:[#allocation2 + $0x58] sm:$0xff]
          %v586 = vld [vmem:[#allocation2 + $0x60] sm:$0xff]
          %v587 = vld [vmem:[#allocation2 + $0x68] sm:$0xff]
          %v588 = vld [vmem:[#allocation2 + $0x70] sm:$0xff]
          %v589 = vld [vmem:[#allocation2 + $0x78] sm:$0xff]
          %590 = vst [vmem:[%s162] sm:$0xff] %v574
          %591 = vst [vmem:[%s162 + $0x8] sm:$0xff] %v575
          %592 = vst [vmem:[%s162 + $0x10] sm:$0xff] %v576
          %593 = vst [vmem:[%s162 + $0x18] sm:$0xff] %v577
          %594 = vst [vmem:[%s162 + $0x20] sm:$0xff] %v578
          %595 = vst [vmem:[%s162 + $0x28] sm:$0xff] %v579
          %596 = vst [vmem:[%s162 + $0x30] sm:$0xff] %v580
          %597 = vst [vmem:[%s162 + $0x38] sm:$0xff] %v581
          %598 = vst [vmem:[%s162 + $0x40] sm:$0xff] %v582
          %599 = vst [vmem:[%s162 + $0x48] sm:$0xff] %v583
          %600 = vst [vmem:[%s162 + $0x50] sm:$0xff] %v584
          %601 = vst [vmem:[%s162 + $0x58] sm:$0xff] %v585
          %602 = vst [vmem:[%s162 + $0x60] sm:$0xff] %v586
          %603 = vst [vmem:[%s162 + $0x68] sm:$0xff] %v587
          %604 = vst [vmem:[%s162 + $0x70] sm:$0xff] %v588
          %605 = vst [vmem:[%s162 + $0x78] sm:$0xff] %v589
        $region36: #{lightgcn_agg.1} parent=27 // pred_fallthru
          _
        %s606 = sand.u32 %s85, 1
        %s607 = scalar_lea.sflag [#allocation4], %s606
        %s608 = sand.u32 %s85, 1
        %s609 = smul.addr %s608, 128
        %s610 = scalar_lea.vmem [#allocation3], %s609
        // Predicated region
        $region37: #{lightgcn_agg.1} parent=27 // pred_check
          %p611 = pneg %p95
        $region38: #{lightgcn_agg.1} parent=27 // pred_check_branch
          %613 = sbr.rel (%p611) target = $region40
        $region39: #{lightgcn_agg.1} parent=27 // pred_region
          %s614 = smul.u32 16, %s20
          %s616 = ssub.s32 2048, 2048
          %617 = vsyncadd %s607, %s616
          %s618 = smul.addr %s614, 128
          %s619 = scalar_lea.hbm %s2, %s618
          %s620 = sshll.u32 %s610, 4
          %s621 = int_to_ptr.vmem [resolvable:$true] %s620
          %626 = dma.vmem_to_hbm [thread:$0]  %s621, 2048, %s619, %s607, 128, 128, 8
        $region40: #{lightgcn_agg.1} parent=27 // pred_fallthru
          _
      $region28: #{lightgcn_agg.1} parent=5 // pred_fallthru
        _
      %p627 = scmp.le.s32.totalorder 2, %s11
      // Predicated region
      $region41: #{lightgcn_agg.1} parent=5 // pred_check
        %p628 = pneg %p627
      $region42: #{lightgcn_agg.1} parent=5 // pred_check_branch
        %630 = sbr.rel (%p628) target = $region44
      $region43: #{lightgcn_agg.1} parent=5 // pred_region
        %s631 = ssub.s32 %s11, 2
        // Predicated region
        $region45: #{lightgcn_agg.1} parent=43 // pred_check
          %p632 = pneg %p101
        $region46: #{lightgcn_agg.1} parent=43 // pred_check_branch
          %634 = sbr.rel (%p632) target = $region48
        $region47: #{lightgcn_agg.1} parent=43 // pred_region
          %s635 = sand.u32 %s86, 1
          %s636 = scalar_lea.sflag [#allocation4], %s635
          %s637 = sand.u32 %s86, 1
          %s638 = smul.addr %s637, 128
          %s639 = scalar_lea.vmem [#allocation3], %s638
          %640 = dma.done %s636, 2048
        $region48: #{lightgcn_agg.1} parent=43 // pred_fallthru
          _
      $region44: #{lightgcn_agg.1} parent=5 // pred_fallthru
        _
    $region6: #{lightgcn_agg.1} parent=1 // loop_footer
      %s15 = sadd.s32 1, %s11
    $region7: #{lightgcn_agg.1} parent=1 // loop_footer_branch
      %10 = sbr.rel target = $region3
    $region8: #{lightgcn_agg.1} parent=1 // loop_exit
      _
    %641 = vsyncpa [#allocation4], 1
    %s642 = scalar_lea.sflag [#allocation4], 1
    %643 = vsyncpa %s642, 1

</llo_original>
